<compile_context>
chip_gen: v6e
topology: v6e:2x2x1
jax: 0.10.0
libtpu: 0.0.40
codegen_flags: <defaults>
</compile_context>

<pallas_src>
import jax
import jax.numpy as jnp
from jax.experimental import pallas as pl
from jax.experimental.pallas import tpu as pltpu

_LANE = 128
_SUB = 8


def _round_up(x, m):
    return ((x + m - 1) // m) * m


def _sentiment_kernel(x_ref, w_ref, b_ref, o_ref):
    # x_ref: [D, 8, TB8] f32 VMEM (dense (sublane, lane) tile per feature)
    # w_ref: [O*D] f32 SMEM (row-major over (o, d));  b_ref: [O] f32 SMEM
    # o_ref: [O, 8, TB8] f32 VMEM (lane-dense output -> unmasked stores)
    D = x_ref.shape[0]
    O = o_ref.shape[0]
    for o in range(O):                         # O == 1 here; static unroll
        acc = w_ref[o * D] * x_ref[0]          # dense [8, TB8] VPU work
        for d in range(1, D):                  # D == 6; static unroll -> 5 more FMAs
            acc = acc + w_ref[o * D + d] * x_ref[d]
        o_ref[o] = jax.nn.sigmoid(acc + b_ref[o])


def sentiment_classifier_forward(feature_vec, weight, bias, *, block_b=128 * 1024,
                                 feature_major=False, min_pallas_batch=0,
                                 vmem_limit_bytes=None):
    """sigmoid(x @ W^T + b).

    feature_vec: [B, D] f32 (or [D, B] if feature_major=True)
    weight:      [O, D] f32 (PyTorch nn.Linear layout), bias: [O] f32
    returns      [B, O] f32
    """
    weight = jnp.asarray(weight, jnp.float32)
    bias = jnp.asarray(bias, jnp.float32)
    O, D = weight.shape

    if feature_major:
        x_t = jnp.asarray(feature_vec, jnp.float32)            # [D, B] from upstream
        D_x, B = x_t.shape
    else:
        x = jnp.asarray(feature_vec, jnp.float32)              # [B, D] PyTorch layout
        B, D_x = x.shape
    assert D_x == D

    # Tiny batches: one fused XLA kernel beats pallas_call + layout plumbing.
    if B < min_pallas_batch:
        if feature_major:
            return jnp.transpose(jax.nn.sigmoid(weight @ x_t + bias[:, None]))
        return jax.nn.sigmoid(x @ weight.T + bias[None, :])

    if not feature_major:
        # One extra HBM pass of x (honest cost, not "free").
        # TODO(synk): have the upstream producer emit feature-major [D, B]
        # activations so this transpose disappears entirely.
        x_t = jnp.transpose(x)                                  # [D, B]

    # Batch -> dense (8 sublane, cols lane) plane. Row-major split => free
    # reshape when B % 8 == 0; otherwise pad by <= 7 columns.
    B8 = _round_up(B, _SUB)
    if B8 != B:
        x_t = jnp.pad(x_t, ((0, 0), (0, B8 - B)))
    cols = B8 // _SUB
    x3 = x_t.reshape(D, _SUB, cols)                             # free row-major split

    # Tile selection: big enough to amortize the ~0.35us per-grid-step overhead,
    # small enough for every generation's default scoped VMEM (~448*tb8 bytes
    # live), and ~cols/8 so large batches still get >= 8 pipelined grid steps.
    tb8_cap = max(_LANE, (block_b // _SUB) // _LANE * _LANE)
    tb8 = min(tb8_cap, max(_LANE, _round_up(pl.cdiv(cols, 8), _LANE)))
    if tb8 >= cols:
        tb8 = cols                                              # full extent (always legal)
    grid = (pl.cdiv(cols, tb8),)                                # ragged last block: Pallas masks it

    w_flat = weight.reshape(-1)                                 # [O*D] -> SMEM scalars
    b_flat = bias.reshape(-1)                                   # [O]   -> SMEM

    cost = pl.CostEstimate(
        flops=2 * D * O * B,
        transcendentals=O * B,
        bytes_accessed=4 * (D * B + O * B + D * O + O),
    )

    out3 = pl.pallas_call(
        _sentiment_kernel,
        out_shape=jax.ShapeDtypeStruct((O, _SUB, cols), jnp.float32),
        grid=grid,
        in_specs=[
            pl.BlockSpec((D, _SUB, tb8), lambda i: (0, 0, i)),          # x tile (VMEM)
            pl.BlockSpec(memory_space=pltpu.MemorySpace.SMEM),          # weights
            pl.BlockSpec(memory_space=pltpu.MemorySpace.SMEM),          # bias
        ],
        out_specs=pl.BlockSpec((O, _SUB, tb8), lambda i: (0, 0, i)),
        compiler_params=pltpu.CompilerParams(
            dimension_semantics=("parallel",),
            vmem_limit_bytes=vmem_limit_bytes),
        cost_estimate=cost,
    )(x3, w_flat, b_flat)

    # [O, 8, cols] -> [B, O]; for O == 1 this is pure metadata (no transpose).
    out = out3.reshape(O, B8)
    out = out.reshape(B8, O) if O == 1 else jnp.transpose(out)
    if B8 != B:
        out = out[:B]
    return out


def reference_forward(feature_vec, weight, bias):
    return jax.nn.sigmoid(feature_vec @ weight.T + bias[None, :])


if __name__ == "__main__":
    key = jax.random.PRNGKey(0)
    k_w, k_b, k_x1, k_x2, k_x3 = jax.random.split(key, 5)

    input_dim, output_size = 6, 1
    weight = jax.random.normal(k_w, (output_size, input_dim), dtype=jnp.float32) * 0.1
    bias = jax.random.normal(k_b, (output_size,), dtype=jnp.float32) * 0.1

    # 1) Small batch (typical module usage) -> single full-extent block.
    x1 = jax.random.normal(k_x1, (8, input_dim), dtype=jnp.float32)
    o1 = jax.block_until_ready(sentiment_classifier_forward(x1, weight, bias))
    assert o1.shape == (8, output_size)
    assert jnp.allclose(o1, reference_forward(x1, weight, bias), atol=1e-5, rtol=1e-5), \
        "mismatch vs reference (small batch)"

    # 2) Multi-step grid with a ragged (Pallas-masked) last block: cols=192, tb8=128.
    x2 = jax.random.normal(k_x2, (1536, input_dim), dtype=jnp.float32)
    o2 = jax.block_until_ready(sentiment_classifier_forward(x2, weight, bias))
    assert o2.shape == (1536, output_size)
    assert jnp.allclose(o2, reference_forward(x2, weight, bias), atol=1e-5, rtol=1e-5), \
        "mismatch vs reference (grid / ragged block path)"

    # 3) Batch not a multiple of 8 (tiny pad + final slice) and the feature-major
    #    layout that skips the wrapper transpose.
    x3 = jax.random.normal(k_x3, (53, input_dim), dtype=jnp.float32)
    ref3 = reference_forward(x3, weight, bias)
    o3 = jax.block_until_ready(sentiment_classifier_forward(x3, weight, bias))
    o3_fm = jax.block_until_ready(
        sentiment_classifier_forward(jnp.transpose(x3), weight, bias, feature_major=True))
    assert o3.shape == (53, output_size)
    assert jnp.allclose(o3, ref3, atol=1e-5, rtol=1e-5), "mismatch vs reference (ragged batch)"
    assert jnp.allclose(o3_fm, ref3, atol=1e-5, rtol=1e-5), "mismatch vs reference (feature-major)"

    print("KERNEL_OK")
</pallas_src>

<mosaic_0001>
module attributes {stable_mosaic.version = 11 : i64} {
  func.func @_sentiment_kernel(%arg0: i32, %arg1: memref<6x8x1xf32, #tpu.memory_space<vmem>>, %arg2: memref<6xf32, #tpu.memory_space<smem>>, %arg3: memref<1xf32, #tpu.memory_space<smem>>, %arg4: memref<1x8x1xf32, #tpu.memory_space<vmem>>) attributes {dimension_semantics = [#tpu.dimension_semantics<parallel>], iteration_bounds = array<i64: 1>, scalar_prefetch = 0 : i64, scratch_operands = 0 : i64, tpu.core_type = #tpu.core_type<tc>, window_params = [{transform_indices = @transform_0, window_bounds = array<i64: 6, 8, 1>}, {transform_indices = @transform_1, window_bounds = array<i64: 6>}, {transform_indices = @transform_2, window_bounds = array<i64: 1>}, {transform_indices = @transform_3, window_bounds = array<i64: 1, 8, 1>}]} {
    %c0 = arith.constant 0 : index
    %0 = memref.load %arg2[%c0] : memref<6xf32, #tpu.memory_space<smem>>
    %c0_0 = arith.constant 0 : index
    %c0_1 = arith.constant 0 : index
    %c0_2 = arith.constant 0 : index
    %1 = vector.load %arg1[%c0_0, %c0_1, %c0_2] : memref<6x8x1xf32, #tpu.memory_space<vmem>>, vector<1x8x1xf32>
    %2 = vector.shape_cast %1 : vector<1x8x1xf32> to vector<8x1xf32>
    %3 = vector.broadcast %0 : f32 to vector<8x1xf32>
    %4 = arith.mulf %3, %2 : vector<8x1xf32>
    %c1 = arith.constant 1 : index
    %5 = memref.load %arg2[%c1] : memref<6xf32, #tpu.memory_space<smem>>
    %c1_3 = arith.constant 1 : index
    %c0_4 = arith.constant 0 : index
    %c0_5 = arith.constant 0 : index
    %6 = vector.load %arg1[%c1_3, %c0_4, %c0_5] : memref<6x8x1xf32, #tpu.memory_space<vmem>>, vector<1x8x1xf32>
    %7 = vector.shape_cast %6 : vector<1x8x1xf32> to vector<8x1xf32>
    %8 = vector.broadcast %5 : f32 to vector<8x1xf32>
    %9 = arith.mulf %8, %7 : vector<8x1xf32>
    %10 = arith.addf %4, %9 : vector<8x1xf32>
    %c2 = arith.constant 2 : index
    %11 = memref.load %arg2[%c2] : memref<6xf32, #tpu.memory_space<smem>>
    %c2_6 = arith.constant 2 : index
    %c0_7 = arith.constant 0 : index
    %c0_8 = arith.constant 0 : index
    %12 = vector.load %arg1[%c2_6, %c0_7, %c0_8] : memref<6x8x1xf32, #tpu.memory_space<vmem>>, vector<1x8x1xf32>
    %13 = vector.shape_cast %12 : vector<1x8x1xf32> to vector<8x1xf32>
    %14 = vector.broadcast %11 : f32 to vector<8x1xf32>
    %15 = arith.mulf %14, %13 : vector<8x1xf32>
    %16 = arith.addf %10, %15 : vector<8x1xf32>
    %c3 = arith.constant 3 : index
    %17 = memref.load %arg2[%c3] : memref<6xf32, #tpu.memory_space<smem>>
    %c3_9 = arith.constant 3 : index
    %c0_10 = arith.constant 0 : index
    %c0_11 = arith.constant 0 : index
    %18 = vector.load %arg1[%c3_9, %c0_10, %c0_11] : memref<6x8x1xf32, #tpu.memory_space<vmem>>, vector<1x8x1xf32>
    %19 = vector.shape_cast %18 : vector<1x8x1xf32> to vector<8x1xf32>
    %20 = vector.broadcast %17 : f32 to vector<8x1xf32>
    %21 = arith.mulf %20, %19 : vector<8x1xf32>
    %22 = arith.addf %16, %21 : vector<8x1xf32>
    %c4 = arith.constant 4 : index
    %23 = memref.load %arg2[%c4] : memref<6xf32, #tpu.memory_space<smem>>
    %c4_12 = arith.constant 4 : index
    %c0_13 = arith.constant 0 : index
    %c0_14 = arith.constant 0 : index
    %24 = vector.load %arg1[%c4_12, %c0_13, %c0_14] : memref<6x8x1xf32, #tpu.memory_space<vmem>>, vector<1x8x1xf32>
    %25 = vector.shape_cast %24 : vector<1x8x1xf32> to vector<8x1xf32>
    %26 = vector.broadcast %23 : f32 to vector<8x1xf32>
    %27 = arith.mulf %26, %25 : vector<8x1xf32>
    %28 = arith.addf %22, %27 : vector<8x1xf32>
    %c5 = arith.constant 5 : index
    %29 = memref.load %arg2[%c5] : memref<6xf32, #tpu.memory_space<smem>>
    %c5_15 = arith.constant 5 : index
    %c0_16 = arith.constant 0 : index
    %c0_17 = arith.constant 0 : index
    %30 = vector.load %arg1[%c5_15, %c0_16, %c0_17] : memref<6x8x1xf32, #tpu.memory_space<vmem>>, vector<1x8x1xf32>
    %31 = vector.shape_cast %30 : vector<1x8x1xf32> to vector<8x1xf32>
    %32 = vector.broadcast %29 : f32 to vector<8x1xf32>
    %33 = arith.mulf %32, %31 : vector<8x1xf32>
    %34 = arith.addf %28, %33 : vector<8x1xf32>
    %c0_18 = arith.constant 0 : index
    %35 = memref.load %arg3[%c0_18] : memref<1xf32, #tpu.memory_space<smem>>
    %36 = vector.broadcast %35 : f32 to vector<8x1xf32>
    %37 = arith.addf %34, %36 : vector<8x1xf32>
    %38 = arith.negf %37 : vector<8x1xf32>
    %39 = math.exp %38 : vector<8x1xf32>
    %cst = arith.constant 1.000000e+00 : f32
    %40 = vector.broadcast %cst : f32 to vector<8x1xf32>
    %41 = arith.addf %40, %39 : vector<8x1xf32>
    %42 = arith.divf %40, %41 : vector<8x1xf32>
    %c0_19 = arith.constant 0 : index
    %c0_20 = arith.constant 0 : index
    %c0_21 = arith.constant 0 : index
    %43 = vector.load %arg4[%c0_19, %c0_20, %c0_21] : memref<1x8x1xf32, #tpu.memory_space<vmem>>, vector<1x8x1xf32>
    %44 = vector.shape_cast %43 : vector<1x8x1xf32> to vector<8x1xf32>
    %45 = vector.shape_cast %42 : vector<8x1xf32> to vector<1x8x1xf32>
    tpu.vector_store %arg4[%c0_19, %c0_20, %c0_21], %45 {strides = array<i32>} : memref<1x8x1xf32, #tpu.memory_space<vmem>>, vector<1x8x1xf32>,
    return
  }
  func.func @transform_0(%arg0: i32) -> (i32, i32, i32) {
    %c0_i32 = arith.constant 0 : i32
    %c0_i32_0 = arith.constant 0 : i32
    %c0_i32_1 = arith.constant 0 : i32
    return %c0_i32, %c0_i32_0, %arg0 : i32, i32, i32
  }
  func.func @transform_1(%arg0: i32) -> i32 {
    %c0_i32 = arith.constant 0 : i32
    %c0_i32_0 = arith.constant 0 : i32
    return %c0_i32 : i32
  }
  func.func @transform_2(%arg0: i32) -> i32 {
    %c0_i32 = arith.constant 0 : i32
    %c0_i32_0 = arith.constant 0 : i32
    return %c0_i32 : i32
  }
  func.func @transform_3(%arg0: i32) -> (i32, i32, i32) {
    %c0_i32 = arith.constant 0 : i32
    %c0_i32_0 = arith.constant 0 : i32
    %c0_i32_1 = arith.constant 0 : i32
    return %c0_i32, %c0_i32_0, %arg0 : i32, i32, i32
  }
}

</mosaic_0001>

<llo_original>
// kernel: tpu_custom_call.1
$region0: #{tpu_custom_call.1}
  #allocation0 [shape = 'u32[]', space=smem, size = 0x4, offset = 0x4, fixed_abs, tag = 'smem constant byte address 0x4 - core index']
  #allocation1 [shape = 'u32[144,128]{1,0:T(1,128)}', space=vmem, size = 0x12000, scoped, tag = 'internal scratch']
  #allocation2 [shape = 'f32[1]{0:T(128)S(6)}', space=smem, size = 0x200, scoped, tag = 'scoped memory for tpu_custom_call.1']
  %s0 = inlined_call_operand.vmem [shape: f32[6,8,1], index: 0, kind: input, shape index: {}]
  %s1 = inlined_call_operand.vmem [shape: f32[6], index: 1, kind: input, shape index: {}]
  %s2 = inlined_call_operand.<no memory space> [shape: f32[1], index: 2, kind: input, shape index: {}]
  %s3 = inlined_call_operand.vmem [shape: f32[1,8,1], index: 3, kind: output, shape index: {}]
  %s4 = sld [smem:[#allocation0]]
  $region26: #{tpu_custom_call.1} parent=0
    _
  %s6 = ssub.s32 1, %s4
  %s7 = scalar_select 0, %s6, %s4
  %8 = sst [smem:[#allocation2]] %s2
  $region1: #{tpu_custom_call.1} parent=0
    #allocation3 [shape = 'u8[512]{0}', space=smem, size = 0x200, scoped, tag = 'input window, operand 1, single buffered']
    #allocation4 [shape = 's32[1]{0}', space=sflag, size = 0x4, scoped, tag = 'scoped memory for tpu_custom_call.1']
    %9 = vsyncpa [#allocation4], 0
    // Predicated region
    $region2: #{tpu_custom_call.1} parent=1 // pred_check
      _
    $region3: #{tpu_custom_call.1} parent=1 // pred_check_branch
      %11 = sbr.rel (0) target = $region5
    $region4: #{tpu_custom_call.1} parent=1 // pred_region
      _
    $region5: #{tpu_custom_call.1} parent=1 // pred_fallthru
      _
    // Predicated region
    $region6: #{tpu_custom_call.1} parent=1 // pred_check
      _
    $region7: #{tpu_custom_call.1} parent=1 // pred_check_branch
      %13 = sbr.rel (0) target = $region9
    $region8: #{tpu_custom_call.1} parent=1 // pred_region
      %s15 = ssub.s32 16, 16
      %16 = vsyncadd [#allocation4], %s15
      %s18 = sshll.u32 %s1, 4
      %s19 = int_to_ptr.vmem [resolvable:$true] %s18
      %21 = dma.vmem_to_smem %s19, 16, [#allocation3], [#allocation4]
    $region9: #{tpu_custom_call.1} parent=1 // pred_fallthru
      _
    // Predicated region
    $region10: #{tpu_custom_call.1} parent=1 // pred_check
      _
    $region11: #{tpu_custom_call.1} parent=1 // pred_check_branch
      %23 = sbr.rel (0) target = $region13
    $region12: #{tpu_custom_call.1} parent=1 // pred_region
      _
    $region13: #{tpu_custom_call.1} parent=1 // pred_fallthru
      _
    // Predicated region
    $region14: #{tpu_custom_call.1} parent=1 // pred_check
      _
    $region15: #{tpu_custom_call.1} parent=1 // pred_check_branch
      %25 = sbr.rel (0) target = $region17
    $region16: #{tpu_custom_call.1} parent=1 // pred_region
      %26 = dma.done [#allocation4], 16
    $region17: #{tpu_custom_call.1} parent=1 // pred_fallthru
      _
    %27 = sfence
    %s28 = sld [smem:[#allocation3]]
    %v29 = vld [vmem:[%s0] sm:$0xff]
    %v30 = vstv %s28
    %v31 = vmul.f32 %v30, %v29
    %s32 = sld [smem:[#allocation3 + $0x1]]
    %s33 = scalar_lea.vmem %s0, 8
    %v34 = vld [vmem:[%s33] sm:$0xff]
    %v35 = vstv %s32
    %v36 = vmul.f32 %v35, %v34
    %v37 = vadd.f32 %v31, %v36
    %s38 = sld [smem:[#allocation3 + $0x2]]
    %s39 = scalar_lea.vmem %s0, 16
    %v40 = vld [vmem:[%s39] sm:$0xff]
    %v41 = vstv %s38
    %v42 = vmul.f32 %v41, %v40
    %v43 = vadd.f32 %v37, %v42
    %s44 = sld [smem:[#allocation3 + $0x3]]
    %s45 = scalar_lea.vmem %s0, 24
    %v46 = vld [vmem:[%s45] sm:$0xff]
    %v47 = vstv %s44
    %v48 = vmul.f32 %v47, %v46
    %v49 = vadd.f32 %v43, %v48
    %s50 = sld [smem:[#allocation3 + $0x4]]
    %s51 = scalar_lea.vmem %s0, 32
    %v52 = vld [vmem:[%s51] sm:$0xff]
    %v53 = vstv %s50
    %v54 = vmul.f32 %v53, %v52
    %v55 = vadd.f32 %v49, %v54
    %s56 = sld [smem:[#allocation3 + $0x5]]
    %s57 = scalar_lea.vmem %s0, 40
    %v58 = vld [vmem:[%s57] sm:$0xff]
    %v59 = vstv %s56
    %v60 = vmul.f32 %v59, %v58
    %v61 = vadd.f32 %v55, %v60
    %s62 = sld [smem:[#allocation2]]
    %v63 = vstv %s62
    %v64 = vadd.f32 %v61, %v63
    %v65 = vxor.u32 %v64, 2147483648
    %v66 = vmul.f32 %v65, 1.442695
    %v67 = vpow.pop %v66
    %v68 = vadd.f32 %v67, 1.0
    %v69 = vrcp.pop %v68
    %v70 = vmul.f32 1.0, %v69
    %vm71 = vcmask 7168
    %72 = vst.msk [vmem:[%s3] sm:$0xff] %vm71, %v70
    // Predicated region
    $region18: #{tpu_custom_call.1} parent=1 // pred_check
      _
    $region19: #{tpu_custom_call.1} parent=1 // pred_check_branch
      %74 = sbr.rel (0) target = $region21
    $region20: #{tpu_custom_call.1} parent=1 // pred_region
      _
    $region21: #{tpu_custom_call.1} parent=1 // pred_fallthru
      _
    // Predicated region
    $region22: #{tpu_custom_call.1} parent=1 // pred_check
      _
    $region23: #{tpu_custom_call.1} parent=1 // pred_check_branch
      %76 = sbr.rel (0) target = $region25
    $region24: #{tpu_custom_call.1} parent=1 // pred_region
      _
    $region25: #{tpu_custom_call.1} parent=1 // pred_fallthru
      _
    %77 = vsyncpa [#allocation4], 1

</llo_original>
